<compile_context>
chip_gen: v7x
topology: tpu7x:2x2x1
jax: 0.10.0
libtpu: 0.0.40
codegen_flags: <defaults>
</compile_context>

<pallas_src>
import jax
import jax.numpy as jnp
from jax import lax
from jax.experimental import pallas as pl
from jax.experimental.pallas import tpu as pltpu


def _fibe_kernel(x_ref, ffwd_ref, finv_ref, o_ref):
    HW = x_ref.shape[1]

    dot = lambda a, b: jnp.dot(a, b, preferred_element_type=jnp.float32)

    # ---- forward 2-D DFT: one dense matmul against [Fr | Fi] -------------
    X = x_ref[...]                               # (TM, HW)
    P = dot(X, ffwd_ref[...])                    # (TM, 2*HW)
    Sr = P[:, :HW]                               # Re(fft2), flattened spectrum
    Si = P[:, HW:]                               # Im(fft2)

    # ---- phase-only spectrum: R = exp(i*angle(S)) = S / |S| --------------
    mag2 = Sr * Sr + Si * Si
    nz = mag2 > 0.0
    inv = jnp.where(nz, lax.rsqrt(mag2), 0.0)    # EUP rsqrt; zero bins -> 0
    Rr = jnp.where(nz, Sr * inv, 1.0)            # angle(0) == 0  ->  1 + 0j
    Ri = Si * inv                                # already 0 where mag2 == 0

    # ---- inverse 2-D DFT (real part), 1/(H*W) folded into finv -----------
    Rcat = jnp.concatenate([Rr, Ri], axis=1)     # (TM, 2*HW), cheap lane copy
    o_ref[...] = dot(Rcat, finv_ref[...])        # (TM, HW)


def _dft_matrices(n):
    """Real / imag parts of the (unnormalized) forward DFT matrix of size n."""
    k = jnp.arange(n, dtype=jnp.float32)
    theta = 2.0 * jnp.pi * jnp.outer(k, k) / n
    # exp(-i*theta) = cos(theta) - i*sin(theta)
    return jnp.cos(theta), -jnp.sin(theta)


def _round_up(a, b):
    return ((a + b - 1) // b) * b


def fibe(x, tm=256):
    """Phase-only reconstruction matching FIBE.forward. x: (B, C, H, W) float32."""
    B, C, H, W = x.shape
    N = B * C
    HW = H * W

    # Free row-major reshape: vec(image)[h*W + w] = x[h, w].
    x_flat = x.reshape(N, HW).astype(jnp.float32)

    # Rows (images) per grid step, a multiple of 8 sublanes.
    Np = _round_up(N, 8)
    if Np <= tm:
        TM = Np
    else:
        TM = tm
        Np = _round_up(Np, TM)
    n_pad = Np - N
    if n_pad:
        x_flat = jnp.concatenate(
            [x_flat, jnp.zeros((n_pad, HW), jnp.float32)], axis=0)

    # Host-side constants (built once).  DFT matrices are symmetric, so the
    # row-vector form S = vec(x) @ kron(A_H, B_W) needs no transpose.
    Ar, Ai = _dft_matrices(H)
    Br, Bi = _dft_matrices(W)
    Fr = jnp.kron(Ar, Br) - jnp.kron(Ai, Bi)           # (HW, HW) Re kron(A,B)
    Fi = jnp.kron(Ar, Bi) + jnp.kron(Ai, Br)           # (HW, HW) Im kron(A,B)
    f_fwd = jnp.concatenate([Fr, Fi], axis=1)          # (HW, 2*HW)
    scale = 1.0 / float(HW)                            # ifft normalization
    f_inv = jnp.concatenate([Fr * scale, Fi * scale], axis=0)  # (2*HW, HW)

    grid = (Np // TM,)
    img_spec = pl.BlockSpec((TM, HW), lambda i: (i, 0))

    out = pl.pallas_call(
        _fibe_kernel,
        out_shape=jax.ShapeDtypeStruct((Np, HW), jnp.float32),
        grid_spec=pltpu.PrefetchScalarGridSpec(
            num_scalar_prefetch=0,
            grid=grid,
            in_specs=[
                img_spec,                                        # x block
                pl.BlockSpec((HW, 2 * HW), lambda i: (0, 0)),    # [Fr | Fi]
                pl.BlockSpec((2 * HW, HW), lambda i: (0, 0)),    # [Fr ; Fi]/(H*W)
            ],
            out_specs=img_spec,
        ),
        compiler_params=pltpu.CompilerParams(
            dimension_semantics=("parallel",),
            vmem_limit_bytes=32 * 1024 * 1024,
        ),
    )(x_flat, f_fwd, f_inv)

    # Free reshape back to NCHW (plus a row-slice if batch padding was added).
    return out[:N].reshape(B, C, H, W)


def _fibe_ref(x):
    """Pure-JAX reference implementing the same semantics (for verification)."""
    spectrum = jnp.fft.fftn(x, axes=(-2, -1))
    phase = jnp.angle(spectrum)
    recon = jnp.exp(1j * phase)
    return jnp.real(jnp.fft.ifftn(recon, axes=(-2, -1))).astype(jnp.float32)


if __name__ == "__main__":
    key = jax.random.PRNGKey(0)
    B, C, H, W = 2, 4, 16, 16
    x = jax.random.normal(key, (B, C, H, W), dtype=jnp.float32)

    out = jax.block_until_ready(fibe(x))
    ref = _fibe_ref(x)

    assert out.shape == (B, C, H, W)
    assert out.dtype == jnp.float32
    err = float(jnp.max(jnp.abs(out - ref)))
    assert err < 1e-3, err

    print("KERNEL_OK")
</pallas_src>

<mosaic_0001>
module attributes {stable_mosaic.version = 11 : i64} {
  func.func @_fibe_kernel(%arg0: i32, %arg1: memref<8x256xf32, #tpu.memory_space<vmem>>, %arg2: memref<256x512xf32, #tpu.memory_space<vmem>>, %arg3: memref<512x256xf32, #tpu.memory_space<vmem>>, %arg4: memref<8x256xf32, #tpu.memory_space<vmem>>) attributes {dimension_semantics = [#tpu.dimension_semantics<parallel>], iteration_bounds = array<i64: 1>, scalar_prefetch = 0 : i64, scratch_operands = 0 : i64, tpu.core_type = #tpu.core_type<tc>, window_params = [{transform_indices = @transform_0, window_bounds = array<i64: 8, 256>}, {pipeline_mode = #tpu.pipeline_mode<synchronous>, transform_indices = @transform_1, window_bounds = array<i64: 256, 512>}, {pipeline_mode = #tpu.pipeline_mode<synchronous>, transform_indices = @transform_2, window_bounds = array<i64: 512, 256>}, {transform_indices = @transform_3, window_bounds = array<i64: 8, 256>}]} {
    %c0 = arith.constant 0 : index
    %c0_0 = arith.constant 0 : index
    %0 = vector.load %arg1[%c0, %c0_0] : memref<8x256xf32, #tpu.memory_space<vmem>>, vector<8x256xf32>
    %c0_1 = arith.constant 0 : index
    %c0_2 = arith.constant 0 : index
    %1 = vector.load %arg2[%c0_1, %c0_2] : memref<256x512xf32, #tpu.memory_space<vmem>>, vector<256x512xf32>
    %cst = arith.constant dense<0.000000e+00> : vector<8x512xf32>
    %2 = tpu.matmul %0, %1, %cst {dimension_numbers = #tpu.dot_dimension_numbers<[1], [0], [0], [1], [0, 0, 1, 1], [], []>} : vector<8x256xf32>, vector<256x512xf32>, vector<8x512xf32> -> vector<8x512xf32>
    %3 = vector.extract_strided_slice %2 {offsets = [0, 0], sizes = [8, 256], strides = [1, 1]} : vector<8x512xf32> to vector<8x256xf32>
    %4 = vector.extract_strided_slice %2 {offsets = [0, 256], sizes = [8, 256], strides = [1, 1]} : vector<8x512xf32> to vector<8x256xf32>
    %5 = arith.mulf %3, %3 : vector<8x256xf32>
    %6 = arith.mulf %4, %4 : vector<8x256xf32>
    %7 = arith.addf %5, %6 : vector<8x256xf32>
    %cst_3 = arith.constant 0.000000e+00 : f32
    %8 = vector.broadcast %cst_3 : f32 to vector<8x256xf32>
    %9 = arith.cmpf ogt, %7, %8 : vector<8x256xf32>
    %10 = math.rsqrt %7 : vector<8x256xf32>
    %cst_4 = arith.constant 0.000000e+00 : f32
    %11 = vector.broadcast %cst_4 : f32 to vector<8x256xf32>
    %12 = arith.select %9, %10, %11 : vector<8x256xi1>, vector<8x256xf32>
    %13 = arith.mulf %3, %12 : vector<8x256xf32>
    %cst_5 = arith.constant 1.000000e+00 : f32
    %14 = vector.broadcast %cst_5 : f32 to vector<8x256xf32>
    %15 = arith.select %9, %13, %14 : vector<8x256xi1>, vector<8x256xf32>
    %16 = arith.mulf %4, %12 : vector<8x256xf32>
    %17 = tpu.concatenate %15, %16 in 1 : vector<8x256xf32>, vector<8x256xf32> -> vector<8x512xf32>
    %c0_6 = arith.constant 0 : index
    %c0_7 = arith.constant 0 : index
    %18 = vector.load %arg3[%c0_6, %c0_7] : memref<512x256xf32, #tpu.memory_space<vmem>>, vector<512x256xf32>
    %cst_8 = arith.constant dense<0.000000e+00> : vector<8x256xf32>
    %19 = tpu.matmul %17, %18, %cst_8 {dimension_numbers = #tpu.dot_dimension_numbers<[1], [0], [0], [1], [0, 0, 1, 1], [], []>} : vector<8x512xf32>, vector<512x256xf32>, vector<8x256xf32> -> vector<8x256xf32>
    %c0_9 = arith.constant 0 : index
    %c0_10 = arith.constant 0 : index
    %20 = vector.load %arg4[%c0_9, %c0_10] : memref<8x256xf32, #tpu.memory_space<vmem>>, vector<8x256xf32>
    tpu.vector_store %arg4[%c0_9, %c0_10], %19 {strides = array<i32>} : memref<8x256xf32, #tpu.memory_space<vmem>>, vector<8x256xf32>,
    return
  }
  func.func @transform_0(%arg0: i32) -> (i32, i32) {
    %c0_i32 = arith.constant 0 : i32
    %c0_i32_0 = arith.constant 0 : i32
    return %arg0, %c0_i32 : i32, i32
  }
  func.func @transform_1(%arg0: i32) -> (i32, i32) {
    %c0_i32 = arith.constant 0 : i32
    %c0_i32_0 = arith.constant 0 : i32
    %c0_i32_1 = arith.constant 0 : i32
    return %c0_i32, %c0_i32_0 : i32, i32
  }
  func.func @transform_2(%arg0: i32) -> (i32, i32) {
    %c0_i32 = arith.constant 0 : i32
    %c0_i32_0 = arith.constant 0 : i32
    %c0_i32_1 = arith.constant 0 : i32
    return %c0_i32, %c0_i32_0 : i32, i32
  }
  func.func @transform_3(%arg0: i32) -> (i32, i32) {
    %c0_i32 = arith.constant 0 : i32
    %c0_i32_0 = arith.constant 0 : i32
    return %arg0, %c0_i32 : i32, i32
  }
}

</mosaic_0001>

<llo_original>
// kernel: tpu_custom_call.1
$region0: #{tpu_custom_call.1}
  #allocation0 [shape = 'u32[]', space=smem, size = 0x4, offset = 0x4, fixed_abs, tag = 'smem constant byte address 0x4 - core index']
  #allocation1 [shape = 'u32[144,128]{1,0:T(1,128)}', space=vmem, size = 0x12000, scoped, tag = 'internal scratch']
  %s0 = inlined_call_operand.hbm [shape: f32[8,256], index: 0, kind: input, shape index: {}]
  %s1 = inlined_call_operand.hbm [shape: f32[256,512], index: 1, kind: input, shape index: {}]
  %s2 = inlined_call_operand.hbm [shape: f32[512,256], index: 2, kind: input, shape index: {}]
  %s3 = inlined_call_operand.hbm [shape: f32[8,256], index: 3, kind: output, shape index: {}]
  %s4 = sld [smem:[#allocation0]]
  $region34: #{tpu_custom_call.1} parent=0
    _
  %s6 = ssub.s32 1, %s4
  %s7 = scalar_select 0, %s6, %s4
  $region1: #{tpu_custom_call.1} parent=0
    #allocation2 [shape = 'u8[8192]{0}', space=vmem, size = 0x2000, scoped, tag = 'input window, operand 0, single buffered']
    #allocation3 [shape = 's32[1]{0}', space=sflag, size = 0x4, scoped, tag = 'scoped memory for tpu_custom_call.1']
    #allocation4 [shape = 's32[1]{0}', space=sflag, size = 0x4, scoped, tag = 'scoped memory for tpu_custom_call.1']
    #allocation5 [shape = 'u8[524288]{0}', space=vmem, size = 0x80000, scoped, tag = 'input window, operand 1, single buffered']
    #allocation6 [shape = 's32[1]{0}', space=sflag, size = 0x4, scoped, tag = 'scoped memory for tpu_custom_call.1']
    #allocation7 [shape = 'u8[524288]{0}', space=vmem, size = 0x80000, scoped, tag = 'input window, operand 2, single buffered']
    #allocation8 [shape = 'u8[8192]{0}', space=vmem, size = 0x2000, scoped, tag = 'output window, operand 0, single buffered']
    %8 = vsyncpa [#allocation3], 0
    %9 = vsyncpa [#allocation6], 0
    %10 = vsyncpa [#allocation4], 0
    // Predicated region
    $region2: #{tpu_custom_call.1} parent=1 // pred_check
      _
    $region3: #{tpu_custom_call.1} parent=1 // pred_check_branch
      %12 = sbr.rel (0) target = $region5
    $region4: #{tpu_custom_call.1} parent=1 // pred_region
      %s14 = ssub.s32 256, 256
      %15 = vsyncadd [#allocation3], %s14
      %s17 = sshll.u32 [#allocation2], 4
      %s18 = int_to_ptr.vmem [resolvable:$true] %s17
      %20 = dma.hbm_to_vmem [thread:$0]  %s0, 256, %s18, [#allocation3]
    $region5: #{tpu_custom_call.1} parent=1 // pred_fallthru
      _
    // Predicated region
    $region6: #{tpu_custom_call.1} parent=1 // pred_check
      _
    $region7: #{tpu_custom_call.1} parent=1 // pred_check_branch
      %22 = sbr.rel (0) target = $region9
    $region8: #{tpu_custom_call.1} parent=1 // pred_region
      %s24 = ssub.s32 16384, 16384
      %25 = vsyncadd [#allocation6], %s24
      %s26 = sshll.u32 [#allocation5], 4
      %s27 = int_to_ptr.vmem [resolvable:$true] %s26
      %32 = dma.hbm_to_vmem [thread:$0]  %s1, 16384, %s27, [#allocation6], 512, 512, 32
    $region9: #{tpu_custom_call.1} parent=1 // pred_fallthru
      _
    // Predicated region
    $region10: #{tpu_custom_call.1} parent=1 // pred_check
      _
    $region11: #{tpu_custom_call.1} parent=1 // pred_check_branch
      %34 = sbr.rel (0) target = $region13
    $region12: #{tpu_custom_call.1} parent=1 // pred_region
      %s36 = ssub.s32 16384, 16384
      %37 = vsyncadd [#allocation6], %s36
      %s38 = sshll.u32 [#allocation7], 4
      %s39 = int_to_ptr.vmem [resolvable:$true] %s38
      %44 = dma.hbm_to_vmem [thread:$0]  %s2, 16384, %s39, [#allocation6], 256, 256, 16
    $region13: #{tpu_custom_call.1} parent=1 // pred_fallthru
      _
    // Predicated region
    $region14: #{tpu_custom_call.1} parent=1 // pred_check
      _
    $region15: #{tpu_custom_call.1} parent=1 // pred_check_branch
      %46 = sbr.rel (0) target = $region17
    $region16: #{tpu_custom_call.1} parent=1 // pred_region
      %47 = dma.done [#allocation3], 256
    $region17: #{tpu_custom_call.1} parent=1 // pred_fallthru
      _
    // Predicated region
    $region18: #{tpu_custom_call.1} parent=1 // pred_check
      _
    $region19: #{tpu_custom_call.1} parent=1 // pred_check_branch
      %49 = sbr.rel (0) target = $region21
    $region20: #{tpu_custom_call.1} parent=1 // pred_region
      %50 = dma.done [#allocation6], 16384
    $region21: #{tpu_custom_call.1} parent=1 // pred_fallthru
      _
    // Predicated region
    $region22: #{tpu_custom_call.1} parent=1 // pred_check
      _
    $region23: #{tpu_custom_call.1} parent=1 // pred_check_branch
      %52 = sbr.rel (0) target = $region25
    $region24: #{tpu_custom_call.1} parent=1 // pred_region
      %53 = dma.done [#allocation6], 16384
    $region25: #{tpu_custom_call.1} parent=1 // pred_fallthru
      _
    %v54 = vld [vmem:[#allocation2] sm:$0xff]
    %v55 = vld [vmem:[#allocation2 + $0x8] sm:$0xff]
    %v56 = vld [vmem:[#allocation5] sm:$0xff]
    %v57 = vld [vmem:[#allocation5 + $0x8] sm:$0xff]
    %v58 = vld [vmem:[#allocation5 + $0x10] sm:$0xff]
    %v59 = vld [vmem:[#allocation5 + $0x18] sm:$0xff]
    %v60 = vld [vmem:[#allocation5 + $0x20] sm:$0xff]
    %v61 = vld [vmem:[#allocation5 + $0x28] sm:$0xff]
    %v62 = vld [vmem:[#allocation5 + $0x30] sm:$0xff]
    %v63 = vld [vmem:[#allocation5 + $0x38] sm:$0xff]
    %v64 = vld [vmem:[#allocation5 + $0x40] sm:$0xff]
    %v65 = vld [vmem:[#allocation5 + $0x48] sm:$0xff]
    %v66 = vld [vmem:[#allocation5 + $0x50] sm:$0xff]
    %v67 = vld [vmem:[#allocation5 + $0x58] sm:$0xff]
    %v68 = vld [vmem:[#allocation5 + $0x60] sm:$0xff]
    %v69 = vld [vmem:[#allocation5 + $0x68] sm:$0xff]
    %v70 = vld [vmem:[#allocation5 + $0x70] sm:$0xff]
    %v71 = vld [vmem:[#allocation5 + $0x78] sm:$0xff]
    %v72 = vld [vmem:[#allocation5 + $0x80] sm:$0xff]
    %v73 = vld [vmem:[#allocation5 + $0x88] sm:$0xff]
    %v74 = vld [vmem:[#allocation5 + $0x90] sm:$0xff]
    %v75 = vld [vmem:[#allocation5 + $0x98] sm:$0xff]
    %v76 = vld [vmem:[#allocation5 + $0xa0] sm:$0xff]
    %v77 = vld [vmem:[#allocation5 + $0xa8] sm:$0xff]
    %v78 = vld [vmem:[#allocation5 + $0xb0] sm:$0xff]
    %v79 = vld [vmem:[#allocation5 + $0xb8] sm:$0xff]
    %v80 = vld [vmem:[#allocation5 + $0xc0] sm:$0xff]
    %v81 = vld [vmem:[#allocation5 + $0xc8] sm:$0xff]
    %v82 = vld [vmem:[#allocation5 + $0xd0] sm:$0xff]
    %v83 = vld [vmem:[#allocation5 + $0xd8] sm:$0xff]
    %v84 = vld [vmem:[#allocation5 + $0xe0] sm:$0xff]
    %v85 = vld [vmem:[#allocation5 + $0xe8] sm:$0xff]
    %v86 = vld [vmem:[#allocation5 + $0xf0] sm:$0xff]
    %v87 = vld [vmem:[#allocation5 + $0xf8] sm:$0xff]
    %v88 = vld [vmem:[#allocation5 + $0x100] sm:$0xff]
    %v89 = vld [vmem:[#allocation5 + $0x108] sm:$0xff]
    %v90 = vld [vmem:[#allocation5 + $0x110] sm:$0xff]
    %v91 = vld [vmem:[#allocation5 + $0x118] sm:$0xff]
    %v92 = vld [vmem:[#allocation5 + $0x120] sm:$0xff]
    %v93 = vld [vmem:[#allocation5 + $0x128] sm:$0xff]
    %v94 = vld [vmem:[#allocation5 + $0x130] sm:$0xff]
    %v95 = vld [vmem:[#allocation5 + $0x138] sm:$0xff]
    %v96 = vld [vmem:[#allocation5 + $0x140] sm:$0xff]
    %v97 = vld [vmem:[#allocation5 + $0x148] sm:$0xff]
    %v98 = vld [vmem:[#allocation5 + $0x150] sm:$0xff]
    %v99 = vld [vmem:[#allocation5 + $0x158] sm:$0xff]
    %v100 = vld [vmem:[#allocation5 + $0x160] sm:$0xff]
    %v101 = vld [vmem:[#allocation5 + $0x168] sm:$0xff]
    %v102 = vld [vmem:[#allocation5 + $0x170] sm:$0xff]
    %v103 = vld [vmem:[#allocation5 + $0x178] sm:$0xff]
    %v104 = vld [vmem:[#allocation5 + $0x180] sm:$0xff]
    %v105 = vld [vmem:[#allocation5 + $0x188] sm:$0xff]
    %v106 = vld [vmem:[#allocation5 + $0x190] sm:$0xff]
    %v107 = vld [vmem:[#allocation5 + $0x198] sm:$0xff]
    %v108 = vld [vmem:[#allocation5 + $0x1a0] sm:$0xff]
    %v109 = vld [vmem:[#allocation5 + $0x1a8] sm:$0xff]
    %v110 = vld [vmem:[#allocation5 + $0x1b0] sm:$0xff]
    %v111 = vld [vmem:[#allocation5 + $0x1b8] sm:$0xff]
    %v112 = vld [vmem:[#allocation5 + $0x1c0] sm:$0xff]
    %v113 = vld [vmem:[#allocation5 + $0x1c8] sm:$0xff]
    %v114 = vld [vmem:[#allocation5 + $0x1d0] sm:$0xff]
    %v115 = vld [vmem:[#allocation5 + $0x1d8] sm:$0xff]
    %v116 = vld [vmem:[#allocation5 + $0x1e0] sm:$0xff]
    %v117 = vld [vmem:[#allocation5 + $0x1e8] sm:$0xff]
    %v118 = vld [vmem:[#allocation5 + $0x1f0] sm:$0xff]
    %v119 = vld [vmem:[#allocation5 + $0x1f8] sm:$0xff]
    %v120 = vld [vmem:[#allocation5 + $0x200] sm:$0xff]
    %v121 = vld [vmem:[#allocation5 + $0x208] sm:$0xff]
    %v122 = vld [vmem:[#allocation5 + $0x210] sm:$0xff]
    %v123 = vld [vmem:[#allocation5 + $0x218] sm:$0xff]
    %v124 = vld [vmem:[#allocation5 + $0x220] sm:$0xff]
    %v125 = vld [vmem:[#allocation5 + $0x228] sm:$0xff]
    %v126 = vld [vmem:[#allocation5 + $0x230] sm:$0xff]
    %v127 = vld [vmem:[#allocation5 + $0x238] sm:$0xff]
    %v128 = vld [vmem:[#allocation5 + $0x240] sm:$0xff]
    %v129 = vld [vmem:[#allocation5 + $0x248] sm:$0xff]
    %v130 = vld [vmem:[#allocation5 + $0x250] sm:$0xff]
    %v131 = vld [vmem:[#allocation5 + $0x258] sm:$0xff]
    %v132 = vld [vmem:[#allocation5 + $0x260] sm:$0xff]
    %v133 = vld [vmem:[#allocation5 + $0x268] sm:$0xff]
    %v134 = vld [vmem:[#allocation5 + $0x270] sm:$0xff]
    %v135 = vld [vmem:[#allocation5 + $0x278] sm:$0xff]
    %v136 = vld [vmem:[#allocation5 + $0x280] sm:$0xff]
    %v137 = vld [vmem:[#allocation5 + $0x288] sm:$0xff]
    %v138 = vld [vmem:[#allocation5 + $0x290] sm:$0xff]
    %v139 = vld [vmem:[#allocation5 + $0x298] sm:$0xff]
    %v140 = vld [vmem:[#allocation5 + $0x2a0] sm:$0xff]
    %v141 = vld [vmem:[#allocation5 + $0x2a8] sm:$0xff]
    %v142 = vld [vmem:[#allocation5 + $0x2b0] sm:$0xff]
    %v143 = vld [vmem:[#allocation5 + $0x2b8] sm:$0xff]
    %v144 = vld [vmem:[#allocation5 + $0x2c0] sm:$0xff]
    %v145 = vld [vmem:[#allocation5 + $0x2c8] sm:$0xff]
    %v146 = vld [vmem:[#allocation5 + $0x2d0] sm:$0xff]
    %v147 = vld [vmem:[#allocation5 + $0x2d8] sm:$0xff]
    %v148 = vld [vmem:[#allocation5 + $0x2e0] sm:$0xff]
    %v149 = vld [vmem:[#allocation5 + $0x2e8] sm:$0xff]
    %v150 = vld [vmem:[#allocation5 + $0x2f0] sm:$0xff]
    %v151 = vld [vmem:[#allocation5 + $0x2f8] sm:$0xff]
    %v152 = vld [vmem:[#allocation5 + $0x300] sm:$0xff]
    %v153 = vld [vmem:[#allocation5 + $0x308] sm:$0xff]
    %v154 = vld [vmem:[#allocation5 + $0x310] sm:$0xff]
    %v155 = vld [vmem:[#allocation5 + $0x318] sm:$0xff]
    %v156 = vld [vmem:[#allocation5 + $0x320] sm:$0xff]
    %v157 = vld [vmem:[#allocation5 + $0x328] sm:$0xff]
    %v158 = vld [vmem:[#allocation5 + $0x330] sm:$0xff]
    %v159 = vld [vmem:[#allocation5 + $0x338] sm:$0xff]
    %v160 = vld [vmem:[#allocation5 + $0x340] sm:$0xff]
    %v161 = vld [vmem:[#allocation5 + $0x348] sm:$0xff]
    %v162 = vld [vmem:[#allocation5 + $0x350] sm:$0xff]
    %v163 = vld [vmem:[#allocation5 + $0x358] sm:$0xff]
    %v164 = vld [vmem:[#allocation5 + $0x360] sm:$0xff]
    %v165 = vld [vmem:[#allocation5 + $0x368] sm:$0xff]
    %v166 = vld [vmem:[#allocation5 + $0x370] sm:$0xff]
    %v167 = vld [vmem:[#allocation5 + $0x378] sm:$0xff]
    %v168 = vld [vmem:[#allocation5 + $0x380] sm:$0xff]
    %v169 = vld [vmem:[#allocation5 + $0x388] sm:$0xff]
    %v170 = vld [vmem:[#allocation5 + $0x390] sm:$0xff]
    %v171 = vld [vmem:[#allocation5 + $0x398] sm:$0xff]
    %v172 = vld [vmem:[#allocation5 + $0x3a0] sm:$0xff]
    %v173 = vld [vmem:[#allocation5 + $0x3a8] sm:$0xff]
    %v174 = vld [vmem:[#allocation5 + $0x3b0] sm:$0xff]
    %v175 = vld [vmem:[#allocation5 + $0x3b8] sm:$0xff]
    %v176 = vld [vmem:[#allocation5 + $0x3c0] sm:$0xff]
    %v177 = vld [vmem:[#allocation5 + $0x3c8] sm:$0xff]
    %v178 = vld [vmem:[#allocation5 + $0x3d0] sm:$0xff]
    %v179 = vld [vmem:[#allocation5 + $0x3d8] sm:$0xff]
    %v180 = vld [vmem:[#allocation5 + $0x3e0] sm:$0xff]
    %v181 = vld [vmem:[#allocation5 + $0x3e8] sm:$0xff]
    %v182 = vld [vmem:[#allocation5 + $0x3f0] sm:$0xff]
    %v183 = vld [vmem:[#allocation5 + $0x3f8] sm:$0xff]
    %184 = vmatprep.subr.mxu0 %v57
    %185 = vmatpush1.msra.mxu0 %v56
    %186 = vmatprep.subr.mxu0 %v61
    %187 = vmatpush1.msra.mxu0 %v60
    %188 = vmatprep.subr.mxu0 %v65
    %189 = vmatpush1.msra.mxu0 %v64
    %190 = vmatprep.subr.mxu0 %v69
    %191 = vmatpush1.msra.mxu0 %v68
    %192 = vmatprep.subr.mxu0 %v73
    %193 = vmatpush1.msra.mxu0 %v72
    %194 = vmatprep.subr.mxu0 %v77
    %195 = vmatpush1.msra.mxu0 %v76
    %196 = vmatprep.subr.mxu0 %v81
    %197 = vmatpush1.msra.mxu0 %v80
    %198 = vmatprep.subr.mxu0 %v85
    %199 = vmatpush1.msra.mxu0 %v84
    %200 = vmatprep.subr.mxu0 %v89
    %201 = vmatpush1.msra.mxu0 %v88
    %202 = vmatprep.subr.mxu0 %v93
    %203 = vmatpush1.msra.mxu0 %v92
    %204 = vmatprep.subr.mxu0 %v97
    %205 = vmatpush1.msra.mxu0 %v96
    %206 = vmatprep.subr.mxu0 %v101
    %207 = vmatpush1.msra.mxu0 %v100
    %208 = vmatprep.subr.mxu0 %v105
    %209 = vmatpush1.msra.mxu0 %v104
    %210 = vmatprep.subr.mxu0 %v109
    %211 = vmatpush1.msra.mxu0 %v108
    %212 = vmatprep.subr.mxu0 %v113
    %213 = vmatpush1.msra.mxu0 %v112
    %214 = vmatprep.subr.mxu0 %v117
    %215 = vmatpush1.msra.mxu0 %v116
    %216 = vmatprep.subr.mxu0 %v121
    %217 = vmatpush1.msra.mxu0 %v120
    %218 = vmatprep.subr.mxu0 %v125
    %219 = vmatpush1.msra.mxu0 %v124
    %220 = vmatprep.subr.mxu0 %v129
    %221 = vmatpush1.msra.mxu0 %v128
    %222 = vmatprep.subr.mxu0 %v133
    %223 = vmatpush1.msra.mxu0 %v132
    %224 = vmatprep.subr.mxu0 %v137
    %225 = vmatpush1.msra.mxu0 %v136
    %226 = vmatprep.subr.mxu0 %v141
    %227 = vmatpush1.msra.mxu0 %v140
    %228 = vmatprep.subr.mxu0 %v145
    %229 = vmatpush1.msra.mxu0 %v144
    %230 = vmatprep.subr.mxu0 %v149
    %231 = vmatpush1.msra.mxu0 %v148
    %232 = vmatprep.subr.mxu0 %v153
    %233 = vmatpush1.msra.mxu0 %v152
    %234 = vmatprep.subr.mxu0 %v157
    %235 = vmatpush1.msra.mxu0 %v156
    %236 = vmatprep.subr.mxu0 %v161
    %237 = vmatpush1.msra.mxu0 %v160
    %238 = vmatprep.subr.mxu0 %v165
    %239 = vmatpush1.msra.mxu0 %v164
    %240 = vmatprep.subr.mxu0 %v169
    %241 = vmatpush1.msra.mxu0 %v168
    %242 = vmatprep.subr.mxu0 %v173
    %243 = vmatpush1.msra.mxu0 %v172
    %244 = vmatprep.subr.mxu0 %v177
    %245 = vmatpush1.msra.mxu0 %v176
    %246 = vmatprep.subr.mxu0 %v181
    %247 = vmatpush1.msra.mxu0 %v180
    %248 = vmatprep.mubr.f32.mxu0 %v55
    %249 = vmatmul.mubr.f32.gmra.mrb[0].mxu0 %v54
    %v250 = vpop.f32.mrb[0].mxu0
    %v251 = vadd.f32 0.0, %v250
    %v252 = vpop.f32.mrb[0].mxu0
    %v253 = vadd.f32 0.0, %v252
    %254 = vdwg.mxu0
    %255 = vmatprep.subr.mxu0 %v59
    %256 = vmatpush1.msra.mxu0 %v58
    %257 = vmatprep.subr.mxu0 %v63
    %258 = vmatpush1.msra.mxu0 %v62
    %259 = vmatprep.subr.mxu0 %v67
    %260 = vmatpush1.msra.mxu0 %v66
    %261 = vmatprep.subr.mxu0 %v71
    %262 = vmatpush1.msra.mxu0 %v70
    %263 = vmatprep.subr.mxu0 %v75
    %264 = vmatpush1.msra.mxu0 %v74
    %265 = vmatprep.subr.mxu0 %v79
    %266 = vmatpush1.msra.mxu0 %v78
    %267 = vmatprep.subr.mxu0 %v83
    %268 = vmatpush1.msra.mxu0 %v82
    %269 = vmatprep.subr.mxu0 %v87
    %270 = vmatpush1.msra.mxu0 %v86
    %271 = vmatprep.subr.mxu0 %v91
    %272 = vmatpush1.msra.mxu0 %v90
    %273 = vmatprep.subr.mxu0 %v95
    %274 = vmatpush1.msra.mxu0 %v94
    %275 = vmatprep.subr.mxu0 %v99
    %276 = vmatpush1.msra.mxu0 %v98
    %277 = vmatprep.subr.mxu0 %v103
    %278 = vmatpush1.msra.mxu0 %v102
    %279 = vmatprep.subr.mxu0 %v107
    %280 = vmatpush1.msra.mxu0 %v106
    %281 = vmatprep.subr.mxu0 %v111
    %282 = vmatpush1.msra.mxu0 %v110
    %283 = vmatprep.subr.mxu0 %v115
    %284 = vmatpush1.msra.mxu0 %v114
    %285 = vmatprep.subr.mxu0 %v119
    %286 = vmatpush1.msra.mxu0 %v118
    %287 = vmatprep.subr.mxu0 %v123
    %288 = vmatpush1.msra.mxu0 %v122
    %289 = vmatprep.subr.mxu0 %v127
    %290 = vmatpush1.msra.mxu0 %v126
    %291 = vmatprep.subr.mxu0 %v131
    %292 = vmatpush1.msra.mxu0 %v130
    %293 = vmatprep.subr.mxu0 %v135
    %294 = vmatpush1.msra.mxu0 %v134
    %295 = vmatprep.subr.mxu0 %v139
    %296 = vmatpush1.msra.mxu0 %v138
    %297 = vmatprep.subr.mxu0 %v143
    %298 = vmatpush1.msra.mxu0 %v142
    %299 = vmatprep.subr.mxu0 %v147
    %300 = vmatpush1.msra.mxu0 %v146
    %301 = vmatprep.subr.mxu0 %v151
    %302 = vmatpush1.msra.mxu0 %v150
    %303 = vmatprep.subr.mxu0 %v155
    %304 = vmatpush1.msra.mxu0 %v154
    %305 = vmatprep.subr.mxu0 %v159
    %306 = vmatpush1.msra.mxu0 %v158
    %307 = vmatprep.subr.mxu0 %v163
    %308 = vmatpush1.msra.mxu0 %v162
    %309 = vmatprep.subr.mxu0 %v167
    %310 = vmatpush1.msra.mxu0 %v166
    %311 = vmatprep.subr.mxu0 %v171
    %312 = vmatpush1.msra.mxu0 %v170
    %313 = vmatprep.subr.mxu0 %v175
    %314 = vmatpush1.msra.mxu0 %v174
    %315 = vmatprep.subr.mxu0 %v179
    %316 = vmatpush1.msra.mxu0 %v178
    %317 = vmatprep.subr.mxu0 %v183
    %318 = vmatpush1.msra.mxu0 %v182
    %319 = vmatprep.mubr.f32.mxu0 %v55
    %320 = vmatmul.mubr.f32.gmra.mrb[0].mxu0 %v54
    %v321 = vpop.f32.mrb[0].mxu0
    %v322 = vadd.f32 0.0, %v321
    %v323 = vpop.f32.mrb[0].mxu0
    %v324 = vadd.f32 0.0, %v323
    %325 = vdwg.mxu0
    %v326 = vmul.f32 %v251, %v251
    %v327 = vmul.f32 %v253, %v253
    %v328 = vmul.f32 %v322, %v322
    %v329 = vmul.f32 %v324, %v324
    %v330 = vadd.f32 %v326, %v328
    %v331 = vadd.f32 %v327, %v329
    %vm332 = vcmp.gt.f32.partialorder %v330, 0.0
    %vm333 = vcmp.gt.f32.partialorder %v331, 0.0
    %v334 = vrsqrt.pop %v330
    %v335 = vrsqrt.pop %v331
    %v336 = vsel %vm332, %v334, 0.0
    %v337 = vsel %vm333, %v335, 0.0
    %v338 = vmul.f32 %v251, %v336
    %v339 = vmul.f32 %v253, %v337
    %v340 = vsel %vm332, %v338, 1.0
    %v341 = vsel %vm333, %v339, 1.0
    %v342 = vmul.f32 %v322, %v336
    %v343 = vmul.f32 %v324, %v337
    %v344 = vld [vmem:[#allocation7] sm:$0xff]
    %v345 = vld [vmem:[#allocation7 + $0x8] sm:$0xff]
    %v346 = vld [vmem:[#allocation7 + $0x10] sm:$0xff]
    %v347 = vld [vmem:[#allocation7 + $0x18] sm:$0xff]
    %v348 = vld [vmem:[#allocation7 + $0x20] sm:$0xff]
    %v349 = vld [vmem:[#allocation7 + $0x28] sm:$0xff]
    %v350 = vld [vmem:[#allocation7 + $0x30] sm:$0xff]
    %v351 = vld [vmem:[#allocation7 + $0x38] sm:$0xff]
    %v352 = vld [vmem:[#allocation7 + $0x40] sm:$0xff]
    %v353 = vld [vmem:[#allocation7 + $0x48] sm:$0xff]
    %v354 = vld [vmem:[#allocation7 + $0x50] sm:$0xff]
    %v355 = vld [vmem:[#allocation7 + $0x58] sm:$0xff]
    %v356 = vld [vmem:[#allocation7 + $0x60] sm:$0xff]
    %v357 = vld [vmem:[#allocation7 + $0x68] sm:$0xff]
    %v358 = vld [vmem:[#allocation7 + $0x70] sm:$0xff]
    %v359 = vld [vmem:[#allocation7 + $0x78] sm:$0xff]
    %v360 = vld [vmem:[#allocation7 + $0x80] sm:$0xff]
    %v361 = vld [vmem:[#allocation7 + $0x88] sm:$0xff]
    %v362 = vld [vmem:[#allocation7 + $0x90] sm:$0xff]
    %v363 = vld [vmem:[#allocation7 + $0x98] sm:$0xff]
    %v364 = vld [vmem:[#allocation7 + $0xa0] sm:$0xff]
    %v365 = vld [vmem:[#allocation7 + $0xa8] sm:$0xff]
    %v366 = vld [vmem:[#allocation7 + $0xb0] sm:$0xff]
    %v367 = vld [vmem:[#allocation7 + $0xb8] sm:$0xff]
    %v368 = vld [vmem:[#allocation7 + $0xc0] sm:$0xff]
    %v369 = vld [vmem:[#allocation7 + $0xc8] sm:$0xff]
    %v370 = vld [vmem:[#allocation7 + $0xd0] sm:$0xff]
    %v371 = vld [vmem:[#allocation7 + $0xd8] sm:$0xff]
    %v372 = vld [vmem:[#allocation7 + $0xe0] sm:$0xff]
    %v373 = vld [vmem:[#allocation7 + $0xe8] sm:$0xff]
    %v374 = vld [vmem:[#allocation7 + $0xf0] sm:$0xff]
    %v375 = vld [vmem:[#allocation7 + $0xf8] sm:$0xff]
    %v376 = vld [vmem:[#allocation7 + $0x100] sm:$0xff]
    %v377 = vld [vmem:[#allocation7 + $0x108] sm:$0xff]
    %v378 = vld [vmem:[#allocation7 + $0x110] sm:$0xff]
    %v379 = vld [vmem:[#allocation7 + $0x118] sm:$0xff]
    %v380 = vld [vmem:[#allocation7 + $0x120] sm:$0xff]
    %v381 = vld [vmem:[#allocation7 + $0x128] sm:$0xff]
    %v382 = vld [vmem:[#allocation7 + $0x130] sm:$0xff]
    %v383 = vld [vmem:[#allocation7 + $0x138] sm:$0xff]
    %v384 = vld [vmem:[#allocation7 + $0x140] sm:$0xff]
    %v385 = vld [vmem:[#allocation7 + $0x148] sm:$0xff]
    %v386 = vld [vmem:[#allocation7 + $0x150] sm:$0xff]
    %v387 = vld [vmem:[#allocation7 + $0x158] sm:$0xff]
    %v388 = vld [vmem:[#allocation7 + $0x160] sm:$0xff]
    %v389 = vld [vmem:[#allocation7 + $0x168] sm:$0xff]
    %v390 = vld [vmem:[#allocation7 + $0x170] sm:$0xff]
    %v391 = vld [vmem:[#allocation7 + $0x178] sm:$0xff]
    %v392 = vld [vmem:[#allocation7 + $0x180] sm:$0xff]
    %v393 = vld [vmem:[#allocation7 + $0x188] sm:$0xff]
    %v394 = vld [vmem:[#allocation7 + $0x190] sm:$0xff]
    %v395 = vld [vmem:[#allocation7 + $0x198] sm:$0xff]
    %v396 = vld [vmem:[#allocation7 + $0x1a0] sm:$0xff]
    %v397 = vld [vmem:[#allocation7 + $0x1a8] sm:$0xff]
    %v398 = vld [vmem:[#allocation7 + $0x1b0] sm:$0xff]
    %v399 = vld [vmem:[#allocation7 + $0x1b8] sm:$0xff]
    %v400 = vld [vmem:[#allocation7 + $0x1c0] sm:$0xff]
    %v401 = vld [vmem:[#allocation7 + $0x1c8] sm:$0xff]
    %v402 = vld [vmem:[#allocation7 + $0x1d0] sm:$0xff]
    %v403 = vld [vmem:[#allocation7 + $0x1d8] sm:$0xff]
    %v404 = vld [vmem:[#allocation7 + $0x1e0] sm:$0xff]
    %v405 = vld [vmem:[#allocation7 + $0x1e8] sm:$0xff]
    %v406 = vld [vmem:[#allocation7 + $0x1f0] sm:$0xff]
    %v407 = vld [vmem:[#allocation7 + $0x1f8] sm:$0xff]
    %v408 = vld [vmem:[#allocation7 + $0x200] sm:$0xff]
    %v409 = vld [vmem:[#allocation7 + $0x208] sm:$0xff]
    %v410 = vld [vmem:[#allocation7 + $0x210] sm:$0xff]
    %v411 = vld [vmem:[#allocation7 + $0x218] sm:$0xff]
    %v412 = vld [vmem:[#allocation7 + $0x220] sm:$0xff]
    %v413 = vld [vmem:[#allocation7 + $0x228] sm:$0xff]
    %v414 = vld [vmem:[#allocation7 + $0x230] sm:$0xff]
    %v415 = vld [vmem:[#allocation7 + $0x238] sm:$0xff]
    %v416 = vld [vmem:[#allocation7 + $0x240] sm:$0xff]
    %v417 = vld [vmem:[#allocation7 + $0x248] sm:$0xff]
    %v418 = vld [vmem:[#allocation7 + $0x250] sm:$0xff]
    %v419 = vld [vmem:[#allocation7 + $0x258] sm:$0xff]
    %v420 = vld [vmem:[#allocation7 + $0x260] sm:$0xff]
    %v421 = vld [vmem:[#allocation7 + $0x268] sm:$0xff]
    %v422 = vld [vmem:[#allocation7 + $0x270] sm:$0xff]
    %v423 = vld [vmem:[#allocation7 + $0x278] sm:$0xff]
    %v424 = vld [vmem:[#allocation7 + $0x280] sm:$0xff]
    %v425 = vld [vmem:[#allocation7 + $0x288] sm:$0xff]
    %v426 = vld [vmem:[#allocation7 + $0x290] sm:$0xff]
    %v427 = vld [vmem:[#allocation7 + $0x298] sm:$0xff]
    %v428 = vld [vmem:[#allocation7 + $0x2a0] sm:$0xff]
    %v429 = vld [vmem:[#allocation7 + $0x2a8] sm:$0xff]
    %v430 = vld [vmem:[#allocation7 + $0x2b0] sm:$0xff]
    %v431 = vld [vmem:[#allocation7 + $0x2b8] sm:$0xff]
    %v432 = vld [vmem:[#allocation7 + $0x2c0] sm:$0xff]
    %v433 = vld [vmem:[#allocation7 + $0x2c8] sm:$0xff]
    %v434 = vld [vmem:[#allocation7 + $0x2d0] sm:$0xff]
    %v435 = vld [vmem:[#allocation7 + $0x2d8] sm:$0xff]
    %v436 = vld [vmem:[#allocation7 + $0x2e0] sm:$0xff]
    %v437 = vld [vmem:[#allocation7 + $0x2e8] sm:$0xff]
    %v438 = vld [vmem:[#allocation7 + $0x2f0] sm:$0xff]
    %v439 = vld [vmem:[#allocation7 + $0x2f8] sm:$0xff]
    %v440 = vld [vmem:[#allocation7 + $0x300] sm:$0xff]
    %v441 = vld [vmem:[#allocation7 + $0x308] sm:$0xff]
    %v442 = vld [vmem:[#allocation7 + $0x310] sm:$0xff]
    %v443 = vld [vmem:[#allocation7 + $0x318] sm:$0xff]
    %v444 = vld [vmem:[#allocation7 + $0x320] sm:$0xff]
    %v445 = vld [vmem:[#allocation7 + $0x328] sm:$0xff]
    %v446 = vld [vmem:[#allocation7 + $0x330] sm:$0xff]
    %v447 = vld [vmem:[#allocation7 + $0x338] sm:$0xff]
    %v448 = vld [vmem:[#allocation7 + $0x340] sm:$0xff]
    %v449 = vld [vmem:[#allocation7 + $0x348] sm:$0xff]
    %v450 = vld [vmem:[#allocation7 + $0x350] sm:$0xff]
    %v451 = vld [vmem:[#allocation7 + $0x358] sm:$0xff]
    %v452 = vld [vmem:[#allocation7 + $0x360] sm:$0xff]
    %v453 = vld [vmem:[#allocation7 + $0x368] sm:$0xff]
    %v454 = vld [vmem:[#allocation7 + $0x370] sm:$0xff]
    %v455 = vld [vmem:[#allocation7 + $0x378] sm:$0xff]
    %v456 = vld [vmem:[#allocation7 + $0x380] sm:$0xff]
    %v457 = vld [vmem:[#allocation7 + $0x388] sm:$0xff]
    %v458 = vld [vmem:[#allocation7 + $0x390] sm:$0xff]
    %v459 = vld [vmem:[#allocation7 + $0x398] sm:$0xff]
    %v460 = vld [vmem:[#allocation7 + $0x3a0] sm:$0xff]
    %v461 = vld [vmem:[#allocation7 + $0x3a8] sm:$0xff]
    %v462 = vld [vmem:[#allocation7 + $0x3b0] sm:$0xff]
    %v463 = vld [vmem:[#allocation7 + $0x3b8] sm:$0xff]
    %v464 = vld [vmem:[#allocation7 + $0x3c0] sm:$0xff]
    %v465 = vld [vmem:[#allocation7 + $0x3c8] sm:$0xff]
    %v466 = vld [vmem:[#allocation7 + $0x3d0] sm:$0xff]
    %v467 = vld [vmem:[#allocation7 + $0x3d8] sm:$0xff]
    %v468 = vld [vmem:[#allocation7 + $0x3e0] sm:$0xff]
    %v469 = vld [vmem:[#allocation7 + $0x3e8] sm:$0xff]
    %v470 = vld [vmem:[#allocation7 + $0x3f0] sm:$0xff]
    %v471 = vld [vmem:[#allocation7 + $0x3f8] sm:$0xff]
    %472 = vmatprep.subr.mxu0 %v345
    %473 = vmatpush1.msra.mxu0 %v344
    %474 = vmatprep.subr.mxu0 %v347
    %475 = vmatpush1.msra.mxu0 %v346
    %476 = vmatprep.subr.mxu0 %v349
    %477 = vmatpush1.msra.mxu0 %v348
    %478 = vmatprep.subr.mxu0 %v351
    %479 = vmatpush1.msra.mxu0 %v350
    %480 = vmatprep.subr.mxu0 %v353
    %481 = vmatpush1.msra.mxu0 %v352
    %482 = vmatprep.subr.mxu0 %v355
    %483 = vmatpush1.msra.mxu0 %v354
    %484 = vmatprep.subr.mxu0 %v357
    %485 = vmatpush1.msra.mxu0 %v356
    %486 = vmatprep.subr.mxu0 %v359
    %487 = vmatpush1.msra.mxu0 %v358
    %488 = vmatprep.subr.mxu0 %v361
    %489 = vmatpush1.msra.mxu0 %v360
    %490 = vmatprep.subr.mxu0 %v363
    %491 = vmatpush1.msra.mxu0 %v362
    %492 = vmatprep.subr.mxu0 %v365
    %493 = vmatpush1.msra.mxu0 %v364
    %494 = vmatprep.subr.mxu0 %v367
    %495 = vmatpush1.msra.mxu0 %v366
    %496 = vmatprep.subr.mxu0 %v369
    %497 = vmatpush1.msra.mxu0 %v368
    %498 = vmatprep.subr.mxu0 %v371
    %499 = vmatpush1.msra.mxu0 %v370
    %500 = vmatprep.subr.mxu0 %v373
    %501 = vmatpush1.msra.mxu0 %v372
    %502 = vmatprep.subr.mxu0 %v375
    %503 = vmatpush1.msra.mxu0 %v374
    %504 = vmatprep.subr.mxu0 %v377
    %505 = vmatpush1.msra.mxu0 %v376
    %506 = vmatprep.subr.mxu0 %v379
    %507 = vmatpush1.msra.mxu0 %v378
    %508 = vmatprep.subr.mxu0 %v381
    %509 = vmatpush1.msra.mxu0 %v380
    %510 = vmatprep.subr.mxu0 %v383
    %511 = vmatpush1.msra.mxu0 %v382
    %512 = vmatprep.subr.mxu0 %v385
    %513 = vmatpush1.msra.mxu0 %v384
    %514 = vmatprep.subr.mxu0 %v387
    %515 = vmatpush1.msra.mxu0 %v386
    %516 = vmatprep.subr.mxu0 %v389
    %517 = vmatpush1.msra.mxu0 %v388
    %518 = vmatprep.subr.mxu0 %v391
    %519 = vmatpush1.msra.mxu0 %v390
    %520 = vmatprep.subr.mxu0 %v393
    %521 = vmatpush1.msra.mxu0 %v392
    %522 = vmatprep.subr.mxu0 %v395
    %523 = vmatpush1.msra.mxu0 %v394
    %524 = vmatprep.subr.mxu0 %v397
    %525 = vmatpush1.msra.mxu0 %v396
    %526 = vmatprep.subr.mxu0 %v399
    %527 = vmatpush1.msra.mxu0 %v398
    %528 = vmatprep.subr.mxu0 %v401
    %529 = vmatpush1.msra.mxu0 %v400
    %530 = vmatprep.subr.mxu0 %v403
    %531 = vmatpush1.msra.mxu0 %v402
    %532 = vmatprep.subr.mxu0 %v405
    %533 = vmatpush1.msra.mxu0 %v404
    %534 = vmatprep.subr.mxu0 %v407
    %535 = vmatpush1.msra.mxu0 %v406
    %536 = vmatprep.mubr.f32.mxu0 %v341
    %537 = vmatmul.mubr.f32.gmra.mrb[0].mxu0 %v340
    %v538 = vpop.f32.mrb[0].mxu0
    %v539 = vadd.f32 0.0, %v538
    %v540 = vpop.f32.mrb[0].mxu0
    %v541 = vadd.f32 0.0, %v540
    %542 = vdwg.mxu0
    %543 = vmatprep.subr.mxu0 %v409
    %544 = vmatpush1.msra.mxu0 %v408
    %545 = vmatprep.subr.mxu0 %v411
    %546 = vmatpush1.msra.mxu0 %v410
    %547 = vmatprep.subr.mxu0 %v413
    %548 = vmatpush1.msra.mxu0 %v412
    %549 = vmatprep.subr.mxu0 %v415
    %550 = vmatpush1.msra.mxu0 %v414
    %551 = vmatprep.subr.mxu0 %v417
    %552 = vmatpush1.msra.mxu0 %v416
    %553 = vmatprep.subr.mxu0 %v419
    %554 = vmatpush1.msra.mxu0 %v418
    %555 = vmatprep.subr.mxu0 %v421
    %556 = vmatpush1.msra.mxu0 %v420
    %557 = vmatprep.subr.mxu0 %v423
    %558 = vmatpush1.msra.mxu0 %v422
    %559 = vmatprep.subr.mxu0 %v425
    %560 = vmatpush1.msra.mxu0 %v424
    %561 = vmatprep.subr.mxu0 %v427
    %562 = vmatpush1.msra.mxu0 %v426
    %563 = vmatprep.subr.mxu0 %v429
    %564 = vmatpush1.msra.mxu0 %v428
    %565 = vmatprep.subr.mxu0 %v431
    %566 = vmatpush1.msra.mxu0 %v430
    %567 = vmatprep.subr.mxu0 %v433
    %568 = vmatpush1.msra.mxu0 %v432
    %569 = vmatprep.subr.mxu0 %v435
    %570 = vmatpush1.msra.mxu0 %v434
    %571 = vmatprep.subr.mxu0 %v437
    %572 = vmatpush1.msra.mxu0 %v436
    %573 = vmatprep.subr.mxu0 %v439
    %574 = vmatpush1.msra.mxu0 %v438
    %575 = vmatprep.subr.mxu0 %v441
    %576 = vmatpush1.msra.mxu0 %v440
    %577 = vmatprep.subr.mxu0 %v443
    %578 = vmatpush1.msra.mxu0 %v442
    %579 = vmatprep.subr.mxu0 %v445
    %580 = vmatpush1.msra.mxu0 %v444
    %581 = vmatprep.subr.mxu0 %v447
    %582 = vmatpush1.msra.mxu0 %v446
    %583 = vmatprep.subr.mxu0 %v449
    %584 = vmatpush1.msra.mxu0 %v448
    %585 = vmatprep.subr.mxu0 %v451
    %586 = vmatpush1.msra.mxu0 %v450
    %587 = vmatprep.subr.mxu0 %v453
    %588 = vmatpush1.msra.mxu0 %v452
    %589 = vmatprep.subr.mxu0 %v455
    %590 = vmatpush1.msra.mxu0 %v454
    %591 = vmatprep.subr.mxu0 %v457
    %592 = vmatpush1.msra.mxu0 %v456
    %593 = vmatprep.subr.mxu0 %v459
    %594 = vmatpush1.msra.mxu0 %v458
    %595 = vmatprep.subr.mxu0 %v461
    %596 = vmatpush1.msra.mxu0 %v460
    %597 = vmatprep.subr.mxu0 %v463
    %598 = vmatpush1.msra.mxu0 %v462
    %599 = vmatprep.subr.mxu0 %v465
    %600 = vmatpush1.msra.mxu0 %v464
    %601 = vmatprep.subr.mxu0 %v467
    %602 = vmatpush1.msra.mxu0 %v466
    %603 = vmatprep.subr.mxu0 %v469
    %604 = vmatpush1.msra.mxu0 %v468
    %605 = vmatprep.subr.mxu0 %v471
    %606 = vmatpush1.msra.mxu0 %v470
    %607 = vmatprep.mubr.f32.mxu0 %v343
    %608 = vmatmul.mubr.f32.gmra.mrb[0].mxu0 %v342
    %v609 = vpop.f32.mrb[0].mxu0
    %v610 = vadd.f32 %v539, %v609
    %v611 = vpop.f32.mrb[0].mxu0
    %v612 = vadd.f32 %v541, %v611
    %613 = vdwg.mxu0
    %614 = vst [vmem:[#allocation8] sm:$0xff] %v610
    %615 = vst [vmem:[#allocation8 + $0x8] sm:$0xff] %v612
    // Predicated region
    $region26: #{tpu_custom_call.1} parent=1 // pred_check
      _
    $region27: #{tpu_custom_call.1} parent=1 // pred_check_branch
      %617 = sbr.rel (0) target = $region29
    $region28: #{tpu_custom_call.1} parent=1 // pred_region
      %s619 = ssub.s32 256, 256
      %620 = vsyncadd [#allocation4], %s619
      %s622 = sshll.u32 [#allocation8], 4
      %s623 = int_to_ptr.vmem [resolvable:$true] %s622
      %625 = dma.vmem_to_hbm [thread:$0]  %s623, 256, %s3, [#allocation4]
    $region29: #{tpu_custom_call.1} parent=1 // pred_fallthru
      _
    // Predicated region
    $region30: #{tpu_custom_call.1} parent=1 // pred_check
      _
    $region31: #{tpu_custom_call.1} parent=1 // pred_check_branch
      %627 = sbr.rel (0) target = $region33
    $region32: #{tpu_custom_call.1} parent=1 // pred_region
      %628 = dma.done [#allocation4], 256
    $region33: #{tpu_custom_call.1} parent=1 // pred_fallthru
      _
    %629 = vsyncpa [#allocation3], 1
    %630 = vsyncpa [#allocation6], 1
    %631 = vsyncpa [#allocation4], 1

</llo_original>
